<compile_context>
chip_gen: v5e
topology: v5e:2x2
jax: 0.10.0
libtpu: 0.0.40
codegen_flags: <defaults>
</compile_context>

<pallas_src>
import jax
import jax.numpy as jnp
from jax.experimental import pallas as pl
from jax.experimental.pallas import tpu as pltpu


IN_DIM = 28 * 28   # 784
H1 = 128
H2 = 64
OUT = 10
H2_PAD = 128       # lane-dense padded width of hidden layer 2
OUT_PAD = 128      # lane-dense padded width of output layer


def _round_up(v, m):
    return ((v + m - 1) // m) * m


def mlp_kernel(x_ref, w1_ref, b1_ref, w2_ref, b2_ref, w3_ref, b3_ref, o_ref):
    # Hot path: three MXU matmuls (f32 accumulation) + f32 bias/ReLU on the VPU,
    # fully fused in VMEM. Weights are VMEM-resident across the whole grid.
    x = x_ref[...]                                                     # (tm, 784) f32 or bf16
    h1 = jnp.dot(x, w1_ref[...], preferred_element_type=jnp.float32) + b1_ref[...]
    h1 = jnp.maximum(h1, 0.0).astype(w2_ref.dtype)                     # (tm, 128)
    h2 = jnp.dot(h1, w2_ref[...], preferred_element_type=jnp.float32) + b2_ref[...]
    h2 = jnp.maximum(h2, 0.0).astype(w3_ref.dtype)                     # (tm, 128), cols 64+ are 0
    o = jnp.dot(h2, w3_ref[...], preferred_element_type=jnp.float32) + b3_ref[...]
    o_ref[...] = o.astype(o_ref.dtype)                                 # (tm, 128) full-lane store


def prepare_params(params, *, allow_bf16=True):
    """One-time parameter prep (call once, reuse across forward calls).

    - Zero-pads the narrow layers to 128 lanes (lane-dense matmuls / stores).
    - Casts weights to bf16 for the fast streaming path (biases stay f32 since
      bias-add happens in the f32 accumulator).
    """
    w1, b1, w2, b2, w3, b3 = params
    cdt = jnp.bfloat16 if allow_bf16 else jnp.float32
    w1c = w1.astype(cdt)                                                        # (784, 128)
    w2p = jnp.zeros((H1, H2_PAD), cdt).at[:, :H2].set(w2.astype(cdt))           # (128, 128)
    w3p = jnp.zeros((H2_PAD, OUT_PAD), cdt).at[:H2, :OUT].set(w3.astype(cdt))   # (128, 128)
    b1c = b1.astype(jnp.float32).reshape(1, H1)
    b2p = jnp.zeros((1, H2_PAD), jnp.float32).at[:, :H2].set(b2.reshape(1, H2).astype(jnp.float32))
    b3p = jnp.zeros((1, OUT_PAD), jnp.float32).at[:, :OUT].set(b3.reshape(1, OUT).astype(jnp.float32))
    return (w1c, b1c, w2p, b2p, w3p, b3p)


def simple_nn_forward(x, prepared_params, *, tm=1024):
    """x: any shape whose trailing dims flatten to 784 per row (e.g. NCHW MNIST).

    prepared_params: output of prepare_params(). The compute/streaming dtype is
    taken from the prepared weights (bf16 fast path or exact-f32 parity path).

    tm: requested batch tile (default 1024 — big tiles amortize the ~0.35 us/step
    grid overhead on this HBM-bound kernel). The effective tile is clamped so it
    never exceeds the batch and so the grid has >= 2 iterations when possible
    (keeps both v7x TensorCores busy under the parallel grid axis).
    """
    w1, b1, w2, b2, w3, b3 = prepared_params
    compute_dtype = w1.dtype
    itemsize = jnp.dtype(compute_dtype).itemsize

    x2d = x.reshape(-1, IN_DIM).astype(compute_dtype)
    B = x2d.shape[0]

    # --- Effective batch tile. Multiple of 16 (covers bf16 sublane packing),
    # never larger than the batch, and split so >=2 grid tiles when B allows.
    tm_req = max(16, _round_up(min(tm, B), 16))
    half = max(16, _round_up(pl.cdiv(B, 2), 16))
    tm_eff = min(tm_req, half)
    n_tiles = pl.cdiv(B, tm_eff)   # Pallas handles the partial final block; no jnp.pad.

    # --- Explicit VMEM budget: 2x streamed x tile + 2x output tile + resident
    # weights + f32 intermediates, with ~2x headroom. (v5e default scoped VMEM is
    # only 16 MiB, so large tiles need this raised explicitly.)
    w_bytes = (IN_DIM * H1 + H1 * H2_PAD + H2_PAD * OUT_PAD) * itemsize \
        + (H1 + H2_PAD + OUT_PAD) * 4
    vmem_est = (2 * tm_eff * IN_DIM * itemsize
                + 2 * tm_eff * OUT_PAD * itemsize
                + 2 * w_bytes
                + 4 * tm_eff * H1 * 4)
    vmem_limit = int(min(2 * vmem_est + (4 << 20), 48 << 20))

    out = pl.pallas_call(
        mlp_kernel,
        out_shape=jax.ShapeDtypeStruct((B, OUT_PAD), compute_dtype),
        grid_spec=pltpu.PrefetchScalarGridSpec(
            num_scalar_prefetch=0,
            grid=(n_tiles,),
            in_specs=[
                pl.BlockSpec((tm_eff, IN_DIM), lambda i: (i, 0)),    # x tile (streamed)
                pl.BlockSpec((IN_DIM, H1), lambda i: (0, 0)),        # w1 (VMEM-resident)
                pl.BlockSpec((1, H1), lambda i: (0, 0)),             # b1 (f32)
                pl.BlockSpec((H1, H2_PAD), lambda i: (0, 0)),        # w2 (padded, resident)
                pl.BlockSpec((1, H2_PAD), lambda i: (0, 0)),         # b2 (padded, f32)
                pl.BlockSpec((H2_PAD, OUT_PAD), lambda i: (0, 0)),   # w3 (padded, resident)
                pl.BlockSpec((1, OUT_PAD), lambda i: (0, 0)),        # b3 (padded, f32)
            ],
            out_specs=pl.BlockSpec((tm_eff, OUT_PAD), lambda i: (i, 0)),
        ),
        compiler_params=pltpu.CompilerParams(
            dimension_semantics=("parallel",),   # shards batch tiles across TCs on v7x
            vmem_limit_bytes=vmem_limit,
        ),
    )(x2d, w1, b1, w2, b2, w3, b3)

    # Trim the lane padding and return f32 logits (XLA slice/cast, effectively free).
    return out[:, :OUT].astype(jnp.float32)


def init_params(key):
    """Deterministic init mimicking nn.Linear's uniform(-1/sqrt(fan_in), +1/sqrt(fan_in)).
    Weights are returned already transposed to (in, out)."""
    def linear(key, fan_in, fan_out):
        kw, kb = jax.random.split(key)
        bound = 1.0 / jnp.sqrt(fan_in)
        w = jax.random.uniform(kw, (fan_in, fan_out), jnp.float32, -bound, bound)
        b = jax.random.uniform(kb, (1, fan_out), jnp.float32, -bound, bound)
        return w, b

    k1, k2, k3 = jax.random.split(key, 3)
    w1, b1 = linear(k1, IN_DIM, H1)
    w2, b2 = linear(k2, H1, H2)
    w3, b3 = linear(k3, H2, OUT)
    return (w1, b1, w2, b2, w3, b3)


def reference_forward(x, params):
    w1, b1, w2, b2, w3, b3 = params
    x2d = x.reshape(-1, IN_DIM).astype(jnp.float32)
    h1 = jnp.maximum(x2d @ w1 + b1, 0.0)
    h2 = jnp.maximum(h1 @ w2 + b2, 0.0)
    return h2 @ w3 + b3


if __name__ == "__main__":
    key = jax.random.PRNGKey(0)
    kx, kx2, kp = jax.random.split(key, 3)
    params = init_params(kp)

    # Hoisted (once-per-model) parameter prep for both modes.
    prep_f32 = prepare_params(params, allow_bf16=False)   # exact f32 parity path
    prep_bf16 = prepare_params(params, allow_bf16=True)   # fast bf16 streaming path

    # 1) f32 parity path, tiny MNIST-like batch (B=6, partial single tile, no padding copies).
    x = jax.random.normal(kx, (6, 1, 28, 28), jnp.float32)
    out = jax.block_until_ready(simple_nn_forward(x, prep_f32))
    ref = reference_forward(x, params)
    assert out.shape == (6, OUT)
    assert jnp.allclose(out, ref, atol=1e-4, rtol=1e-4), "mismatch vs JAX reference (f32, small batch)"

    # 2) f32 path, multi-tile grid with a partial final tile (B=40, tm=16 -> 3 tiles).
    x_big = jax.random.normal(kx2, (40, 1, 28, 28), jnp.float32)
    out_big = jax.block_until_ready(simple_nn_forward(x_big, prep_f32, tm=16))
    ref_big = reference_forward(x_big, params)
    assert out_big.shape == (40, OUT)
    assert jnp.allclose(out_big, ref_big, atol=1e-4, rtol=1e-4), "mismatch vs JAX reference (f32, multi-tile)"

    # 3) bf16 streaming path (default perf config): exercises the two-tile clamp
    #    (tm_eff=32 -> 2 tiles for B=40) and the bf16 output slab. Relaxed tolerance.
    out_bf = jax.block_until_ready(simple_nn_forward(x_big, prep_bf16))
    assert out_bf.shape == (40, OUT)
    assert jnp.allclose(out_bf, ref_big, atol=0.15, rtol=0.05), "mismatch vs JAX reference (bf16 path)"

    print("KERNEL_OK")
</pallas_src>

<mosaic_0001>
module attributes {stable_mosaic.version = 11 : i64} {
  func.func @mlp_kernel(%arg0: i32, %arg1: memref<16x784xf32, #tpu.memory_space<vmem>>, %arg2: memref<784x128xf32, #tpu.memory_space<vmem>>, %arg3: memref<1x128xf32, #tpu.memory_space<vmem>>, %arg4: memref<128x128xf32, #tpu.memory_space<vmem>>, %arg5: memref<1x128xf32, #tpu.memory_space<vmem>>, %arg6: memref<128x128xf32, #tpu.memory_space<vmem>>, %arg7: memref<1x128xf32, #tpu.memory_space<vmem>>, %arg8: memref<16x128xf32, #tpu.memory_space<vmem>>) attributes {dimension_semantics = [#tpu.dimension_semantics<parallel>], iteration_bounds = array<i64: 1>, scalar_prefetch = 0 : i64, scratch_operands = 0 : i64, tpu.core_type = #tpu.core_type<tc>, window_params = [{transform_indices = @transform_0, window_bounds = array<i64: 16, 784>}, {pipeline_mode = #tpu.pipeline_mode<synchronous>, transform_indices = @transform_1, window_bounds = array<i64: 784, 128>}, {pipeline_mode = #tpu.pipeline_mode<synchronous>, transform_indices = @transform_2, window_bounds = array<i64: 1, 128>}, {pipeline_mode = #tpu.pipeline_mode<synchronous>, transform_indices = @transform_3, window_bounds = array<i64: 128, 128>}, {pipeline_mode = #tpu.pipeline_mode<synchronous>, transform_indices = @transform_4, window_bounds = array<i64: 1, 128>}, {pipeline_mode = #tpu.pipeline_mode<synchronous>, transform_indices = @transform_5, window_bounds = array<i64: 128, 128>}, {pipeline_mode = #tpu.pipeline_mode<synchronous>, transform_indices = @transform_6, window_bounds = array<i64: 1, 128>}, {transform_indices = @transform_7, window_bounds = array<i64: 16, 128>}]} {
    %c0 = arith.constant 0 : index
    %c0_0 = arith.constant 0 : index
    %0 = vector.load %arg1[%c0, %c0_0] : memref<16x784xf32, #tpu.memory_space<vmem>>, vector<16x784xf32>
    %c0_1 = arith.constant 0 : index
    %c0_2 = arith.constant 0 : index
    %1 = vector.load %arg2[%c0_1, %c0_2] : memref<784x128xf32, #tpu.memory_space<vmem>>, vector<784x128xf32>
    %cst = arith.constant dense<0.000000e+00> : vector<16x128xf32>
    %2 = tpu.matmul %0, %1, %cst {dimension_numbers = #tpu.dot_dimension_numbers<[1], [0], [0], [1], [0, 0, 1, 1], [], []>} : vector<16x784xf32>, vector<784x128xf32>, vector<16x128xf32> -> vector<16x128xf32>
    %c0_3 = arith.constant 0 : index
    %c0_4 = arith.constant 0 : index
    %3 = vector.load %arg3[%c0_3, %c0_4] : memref<1x128xf32, #tpu.memory_space<vmem>>, vector<1x128xf32>
    %4 = vector.broadcast %3 : vector<1x128xf32> to vector<16x128xf32>
    %5 = arith.addf %2, %4 : vector<16x128xf32>
    %cst_5 = arith.constant 0.000000e+00 : f32
    %6 = vector.broadcast %cst_5 : f32 to vector<16x128xf32>
    %7 = arith.maximumf %5, %6 : vector<16x128xf32>
    %c0_6 = arith.constant 0 : index
    %c0_7 = arith.constant 0 : index
    %8 = vector.load %arg4[%c0_6, %c0_7] : memref<128x128xf32, #tpu.memory_space<vmem>>, vector<128x128xf32>
    %cst_8 = arith.constant dense<0.000000e+00> : vector<16x128xf32>
    %9 = tpu.matmul %7, %8, %cst_8 {dimension_numbers = #tpu.dot_dimension_numbers<[1], [0], [0], [1], [0, 0, 1, 1], [], []>} : vector<16x128xf32>, vector<128x128xf32>, vector<16x128xf32> -> vector<16x128xf32>
    %c0_9 = arith.constant 0 : index
    %c0_10 = arith.constant 0 : index
    %10 = vector.load %arg5[%c0_9, %c0_10] : memref<1x128xf32, #tpu.memory_space<vmem>>, vector<1x128xf32>
    %11 = vector.broadcast %10 : vector<1x128xf32> to vector<16x128xf32>
    %12 = arith.addf %9, %11 : vector<16x128xf32>
    %cst_11 = arith.constant 0.000000e+00 : f32
    %13 = vector.broadcast %cst_11 : f32 to vector<16x128xf32>
    %14 = arith.maximumf %12, %13 : vector<16x128xf32>
    %c0_12 = arith.constant 0 : index
    %c0_13 = arith.constant 0 : index
    %15 = vector.load %arg6[%c0_12, %c0_13] : memref<128x128xf32, #tpu.memory_space<vmem>>, vector<128x128xf32>
    %cst_14 = arith.constant dense<0.000000e+00> : vector<16x128xf32>
    %16 = tpu.matmul %14, %15, %cst_14 {dimension_numbers = #tpu.dot_dimension_numbers<[1], [0], [0], [1], [0, 0, 1, 1], [], []>} : vector<16x128xf32>, vector<128x128xf32>, vector<16x128xf32> -> vector<16x128xf32>
    %c0_15 = arith.constant 0 : index
    %c0_16 = arith.constant 0 : index
    %17 = vector.load %arg7[%c0_15, %c0_16] : memref<1x128xf32, #tpu.memory_space<vmem>>, vector<1x128xf32>
    %18 = vector.broadcast %17 : vector<1x128xf32> to vector<16x128xf32>
    %19 = arith.addf %16, %18 : vector<16x128xf32>
    %c0_17 = arith.constant 0 : index
    %c0_18 = arith.constant 0 : index
    %20 = vector.load %arg8[%c0_17, %c0_18] : memref<16x128xf32, #tpu.memory_space<vmem>>, vector<16x128xf32>
    tpu.vector_store %arg8[%c0_17, %c0_18], %19 {strides = array<i32>} : memref<16x128xf32, #tpu.memory_space<vmem>>, vector<16x128xf32>,
    return
  }
  func.func @transform_0(%arg0: i32) -> (i32, i32) {
    %c0_i32 = arith.constant 0 : i32
    %c0_i32_0 = arith.constant 0 : i32
    return %arg0, %c0_i32 : i32, i32
  }
  func.func @transform_1(%arg0: i32) -> (i32, i32) {
    %c0_i32 = arith.constant 0 : i32
    %c0_i32_0 = arith.constant 0 : i32
    %c0_i32_1 = arith.constant 0 : i32
    return %c0_i32, %c0_i32_0 : i32, i32
  }
  func.func @transform_2(%arg0: i32) -> (i32, i32) {
    %c0_i32 = arith.constant 0 : i32
    %c0_i32_0 = arith.constant 0 : i32
    %c0_i32_1 = arith.constant 0 : i32
    return %c0_i32, %c0_i32_0 : i32, i32
  }
  func.func @transform_3(%arg0: i32) -> (i32, i32) {
    %c0_i32 = arith.constant 0 : i32
    %c0_i32_0 = arith.constant 0 : i32
    %c0_i32_1 = arith.constant 0 : i32
    return %c0_i32, %c0_i32_0 : i32, i32
  }
  func.func @transform_4(%arg0: i32) -> (i32, i32) {
    %c0_i32 = arith.constant 0 : i32
    %c0_i32_0 = arith.constant 0 : i32
    %c0_i32_1 = arith.constant 0 : i32
    return %c0_i32, %c0_i32_0 : i32, i32
  }
  func.func @transform_5(%arg0: i32) -> (i32, i32) {
    %c0_i32 = arith.constant 0 : i32
    %c0_i32_0 = arith.constant 0 : i32
    %c0_i32_1 = arith.constant 0 : i32
    return %c0_i32, %c0_i32_0 : i32, i32
  }
  func.func @transform_6(%arg0: i32) -> (i32, i32) {
    %c0_i32 = arith.constant 0 : i32
    %c0_i32_0 = arith.constant 0 : i32
    %c0_i32_1 = arith.constant 0 : i32
    return %c0_i32, %c0_i32_0 : i32, i32
  }
  func.func @transform_7(%arg0: i32) -> (i32, i32) {
    %c0_i32 = arith.constant 0 : i32
    %c0_i32_0 = arith.constant 0 : i32
    return %arg0, %c0_i32 : i32, i32
  }
}

</mosaic_0001>

<llo_original>
// kernel: tpu_custom_call.1
$region0: #{tpu_custom_call.1}
  #allocation0 [shape = 'u32[]', space=smem, size = 0x4, offset = 0x4, fixed_abs, tag = 'smem constant byte address 0x4 - core index']
  #allocation1 [shape = 'u32[72,128]{1,0:T(1,128)}', space=vmem, size = 0x9000, scoped, tag = 'internal scratch']
  %s0 = inlined_call_operand.hbm [shape: f32[6,784], index: 0, kind: input, shape index: {}]
  %s1 = inlined_call_operand.hbm [shape: f32[784,128], index: 1, kind: input, shape index: {}]
  %s2 = inlined_call_operand.vmem [shape: f32[1,128], index: 2, kind: input, shape index: {}]
  %s3 = inlined_call_operand.hbm [shape: f32[128,128], index: 3, kind: input, shape index: {}]
  %s4 = inlined_call_operand.vmem [shape: f32[1,128], index: 4, kind: input, shape index: {}]
  %s5 = inlined_call_operand.hbm [shape: f32[128,128], index: 5, kind: input, shape index: {}]
  %s6 = inlined_call_operand.vmem [shape: f32[1,128], index: 6, kind: input, shape index: {}]
  %s7 = inlined_call_operand.hbm [shape: f32[6,128], index: 7, kind: output, shape index: {}]
  %s8 = sld [smem:[#allocation0]]
  $region54: #{tpu_custom_call.1} parent=0
    _
  %s10 = ssub.s32 1, %s8
  %s11 = scalar_select 0, %s10, %s8
  $region1: #{tpu_custom_call.1} parent=0
    #allocation2 [shape = 'u8[57344]{0}', space=vmem, size = 0xe000, scoped, tag = 'input window, operand 0, single buffered']
    #allocation3 [shape = 's32[1]{0}', space=sflag, size = 0x4, scoped, tag = 'scoped memory for tpu_custom_call.1']
    #allocation4 [shape = 's32[1]{0}', space=sflag, size = 0x4, scoped, tag = 'scoped memory for tpu_custom_call.1']
    #allocation5 [shape = 'u8[401408]{0}', space=vmem, size = 0x62000, scoped, tag = 'input window, operand 1, single buffered']
    #allocation6 [shape = 's32[1]{0}', space=sflag, size = 0x4, scoped, tag = 'scoped memory for tpu_custom_call.1']
    #allocation7 [shape = 'u8[65536]{0}', space=vmem, size = 0x10000, scoped, tag = 'input window, operand 3, single buffered']
    #allocation8 [shape = 'u8[65536]{0}', space=vmem, size = 0x10000, scoped, tag = 'input window, operand 5, single buffered']
    #allocation9 [shape = 's32[1]{0}', space=sflag, size = 0x4, scoped, tag = 'scoped memory for tpu_custom_call.1']
    #allocation10 [shape = 'u8[8192]{0}', space=vmem, size = 0x2000, scoped, tag = 'output window, operand 0, single buffered']
    %12 = vsyncpa [#allocation3], 0
    %13 = vsyncpa [#allocation6], 0
    %14 = vsyncpa [#allocation9], 0
    %15 = vsyncpa [#allocation4], 0
    // Predicated region
    $region2: #{tpu_custom_call.1} parent=1 // pred_check
      _
    $region3: #{tpu_custom_call.1} parent=1 // pred_check_branch
      %17 = sbr.rel (0) target = $region5
    $region4: #{tpu_custom_call.1} parent=1 // pred_region
      %19 = vsyncadd [#allocation3], 896
      %s20 = sshll.u32 %s0, 4
      %s21 = int_to_ptr.hbm [resolvable:$true] %s20
      %s22 = sshll.u32 [#allocation2], 4
      %s23 = int_to_ptr.vmem [resolvable:$true] %s22
      %28 = dma.hbm_to_vmem [thread:$0]  %s21, 896, %s23, [#allocation3], 896, 896, 56
    $region5: #{tpu_custom_call.1} parent=1 // pred_fallthru
      _
    // Predicated region
    $region6: #{tpu_custom_call.1} parent=1 // pred_check
      _
    $region7: #{tpu_custom_call.1} parent=1 // pred_check_branch
      %30 = sbr.rel (0) target = $region9
    $region8: #{tpu_custom_call.1} parent=1 // pred_region
      %32 = vsyncadd [#allocation6], 0
      %s33 = sshll.u32 %s1, 4
      %s34 = int_to_ptr.hbm [resolvable:$true] %s33
      %s35 = sshll.u32 [#allocation5], 4
      %s36 = int_to_ptr.vmem [resolvable:$true] %s35
      %41 = dma.hbm_to_vmem [thread:$0]  %s34, 12544, %s36, [#allocation6], 128, 128, 8
    $region9: #{tpu_custom_call.1} parent=1 // pred_fallthru
      _
    // Predicated region
    $region10: #{tpu_custom_call.1} parent=1 // pred_check
      _
    $region11: #{tpu_custom_call.1} parent=1 // pred_check_branch
      %43 = sbr.rel (0) target = $region13
    $region12: #{tpu_custom_call.1} parent=1 // pred_region
      _
    $region13: #{tpu_custom_call.1} parent=1 // pred_fallthru
      _
    // Predicated region
    $region14: #{tpu_custom_call.1} parent=1 // pred_check
      _
    $region15: #{tpu_custom_call.1} parent=1 // pred_check_branch
      %45 = sbr.rel (0) target = $region17
    $region16: #{tpu_custom_call.1} parent=1 // pred_region
      %47 = vsyncadd [#allocation6], 0
      %s48 = sshll.u32 %s3, 4
      %s49 = int_to_ptr.hbm [resolvable:$true] %s48
      %s50 = sshll.u32 [#allocation7], 4
      %s51 = int_to_ptr.vmem [resolvable:$true] %s50
      %56 = dma.hbm_to_vmem [thread:$0]  %s49, 2048, %s51, [#allocation6], 128, 128, 8
    $region17: #{tpu_custom_call.1} parent=1 // pred_fallthru
      _
    // Predicated region
    $region18: #{tpu_custom_call.1} parent=1 // pred_check
      _
    $region19: #{tpu_custom_call.1} parent=1 // pred_check_branch
      %58 = sbr.rel (0) target = $region21
    $region20: #{tpu_custom_call.1} parent=1 // pred_region
      _
    $region21: #{tpu_custom_call.1} parent=1 // pred_fallthru
      _
    // Predicated region
    $region22: #{tpu_custom_call.1} parent=1 // pred_check
      _
    $region23: #{tpu_custom_call.1} parent=1 // pred_check_branch
      %60 = sbr.rel (0) target = $region25
    $region24: #{tpu_custom_call.1} parent=1 // pred_region
      %62 = vsyncadd [#allocation9], 0
      %s63 = sshll.u32 %s5, 4
      %s64 = int_to_ptr.hbm [resolvable:$true] %s63
      %s65 = sshll.u32 [#allocation8], 4
      %s66 = int_to_ptr.vmem [resolvable:$true] %s65
      %71 = dma.hbm_to_vmem [thread:$0]  %s64, 2048, %s66, [#allocation9], 128, 128, 8
    $region25: #{tpu_custom_call.1} parent=1 // pred_fallthru
      _
    // Predicated region
    $region26: #{tpu_custom_call.1} parent=1 // pred_check
      _
    $region27: #{tpu_custom_call.1} parent=1 // pred_check_branch
      %73 = sbr.rel (0) target = $region29
    $region28: #{tpu_custom_call.1} parent=1 // pred_region
      _
    $region29: #{tpu_custom_call.1} parent=1 // pred_fallthru
      _
    // Predicated region
    $region30: #{tpu_custom_call.1} parent=1 // pred_check
      _
    $region31: #{tpu_custom_call.1} parent=1 // pred_check_branch
      %75 = sbr.rel (0) target = $region33
    $region32: #{tpu_custom_call.1} parent=1 // pred_region
      %77 = dma.done [#allocation3], 1792
    $region33: #{tpu_custom_call.1} parent=1 // pred_fallthru
      _
    // Predicated region
    $region34: #{tpu_custom_call.1} parent=1 // pred_check
      _
    $region35: #{tpu_custom_call.1} parent=1 // pred_check_branch
      %79 = sbr.rel (0) target = $region37
    $region36: #{tpu_custom_call.1} parent=1 // pred_region
      %81 = dma.done [#allocation6], 12544
    $region37: #{tpu_custom_call.1} parent=1 // pred_fallthru
      _
    // Predicated region
    $region38: #{tpu_custom_call.1} parent=1 // pred_check
      _
    $region39: #{tpu_custom_call.1} parent=1 // pred_check_branch
      %83 = sbr.rel (0) target = $region41
    $region40: #{tpu_custom_call.1} parent=1 // pred_region
      %85 = dma.done [#allocation6], 2048
    $region41: #{tpu_custom_call.1} parent=1 // pred_fallthru
      _
    // Predicated region
    $region42: #{tpu_custom_call.1} parent=1 // pred_check
      _
    $region43: #{tpu_custom_call.1} parent=1 // pred_check_branch
      %87 = sbr.rel (0) target = $region45
    $region44: #{tpu_custom_call.1} parent=1 // pred_region
      %89 = dma.done [#allocation9], 2048
    $region45: #{tpu_custom_call.1} parent=1 // pred_fallthru
      _
    %v90 = vld [vmem:[#allocation2] sm:$0xff]
    %v91 = vld [vmem:[#allocation2 + $0x8] sm:$0xff]
    %v92 = vld [vmem:[#allocation2 + $0x10] sm:$0xff]
    %v93 = vld [vmem:[#allocation2 + $0x18] sm:$0xff]
    %v94 = vld [vmem:[#allocation2 + $0x20] sm:$0xff]
    %v95 = vld [vmem:[#allocation2 + $0x28] sm:$0xff]
    %v96 = vld [vmem:[#allocation2 + $0x30] sm:$0xff]
    %v97 = vld [vmem:[#allocation2 + $0x38] sm:$0xff]
    %v98 = vld [vmem:[#allocation2 + $0x40] sm:$0xff]
    %v99 = vld [vmem:[#allocation2 + $0x48] sm:$0xff]
    %v100 = vld [vmem:[#allocation2 + $0x50] sm:$0xff]
    %v101 = vld [vmem:[#allocation2 + $0x58] sm:$0xff]
    %v102 = vld [vmem:[#allocation2 + $0x60] sm:$0xff]
    %v103 = vld [vmem:[#allocation2 + $0x68] sm:$0xff]
    %v104 = vld [vmem:[#allocation5] sm:$0xff]
    %v105 = vld [vmem:[#allocation5 + $0x8] sm:$0xff]
    %v106 = vld [vmem:[#allocation5 + $0x10] sm:$0xff]
    %v107 = vld [vmem:[#allocation5 + $0x18] sm:$0xff]
    %v108 = vld [vmem:[#allocation5 + $0x20] sm:$0xff]
    %v109 = vld [vmem:[#allocation5 + $0x28] sm:$0xff]
    %v110 = vld [vmem:[#allocation5 + $0x30] sm:$0xff]
    %v111 = vld [vmem:[#allocation5 + $0x38] sm:$0xff]
    %v112 = vld [vmem:[#allocation5 + $0x40] sm:$0xff]
    %v113 = vld [vmem:[#allocation5 + $0x48] sm:$0xff]
    %v114 = vld [vmem:[#allocation5 + $0x50] sm:$0xff]
    %v115 = vld [vmem:[#allocation5 + $0x58] sm:$0xff]
    %v116 = vld [vmem:[#allocation5 + $0x60] sm:$0xff]
    %v117 = vld [vmem:[#allocation5 + $0x68] sm:$0xff]
    %v118 = vld [vmem:[#allocation5 + $0x70] sm:$0xff]
    %v119 = vld [vmem:[#allocation5 + $0x78] sm:$0xff]
    %v120 = vld [vmem:[#allocation5 + $0x80] sm:$0xff]
    %v121 = vld [vmem:[#allocation5 + $0x88] sm:$0xff]
    %v122 = vld [vmem:[#allocation5 + $0x90] sm:$0xff]
    %v123 = vld [vmem:[#allocation5 + $0x98] sm:$0xff]
    %v124 = vld [vmem:[#allocation5 + $0xa0] sm:$0xff]
    %v125 = vld [vmem:[#allocation5 + $0xa8] sm:$0xff]
    %v126 = vld [vmem:[#allocation5 + $0xb0] sm:$0xff]
    %v127 = vld [vmem:[#allocation5 + $0xb8] sm:$0xff]
    %v128 = vld [vmem:[#allocation5 + $0xc0] sm:$0xff]
    %v129 = vld [vmem:[#allocation5 + $0xc8] sm:$0xff]
    %v130 = vld [vmem:[#allocation5 + $0xd0] sm:$0xff]
    %v131 = vld [vmem:[#allocation5 + $0xd8] sm:$0xff]
    %v132 = vld [vmem:[#allocation5 + $0xe0] sm:$0xff]
    %v133 = vld [vmem:[#allocation5 + $0xe8] sm:$0xff]
    %v134 = vld [vmem:[#allocation5 + $0xf0] sm:$0xff]
    %v135 = vld [vmem:[#allocation5 + $0xf8] sm:$0xff]
    %v136 = vld [vmem:[#allocation5 + $0x100] sm:$0xff]
    %v137 = vld [vmem:[#allocation5 + $0x108] sm:$0xff]
    %v138 = vld [vmem:[#allocation5 + $0x110] sm:$0xff]
    %v139 = vld [vmem:[#allocation5 + $0x118] sm:$0xff]
    %v140 = vld [vmem:[#allocation5 + $0x120] sm:$0xff]
    %v141 = vld [vmem:[#allocation5 + $0x128] sm:$0xff]
    %v142 = vld [vmem:[#allocation5 + $0x130] sm:$0xff]
    %v143 = vld [vmem:[#allocation5 + $0x138] sm:$0xff]
    %v144 = vld [vmem:[#allocation5 + $0x140] sm:$0xff]
    %v145 = vld [vmem:[#allocation5 + $0x148] sm:$0xff]
    %v146 = vld [vmem:[#allocation5 + $0x150] sm:$0xff]
    %v147 = vld [vmem:[#allocation5 + $0x158] sm:$0xff]
    %v148 = vld [vmem:[#allocation5 + $0x160] sm:$0xff]
    %v149 = vld [vmem:[#allocation5 + $0x168] sm:$0xff]
    %v150 = vld [vmem:[#allocation5 + $0x170] sm:$0xff]
    %v151 = vld [vmem:[#allocation5 + $0x178] sm:$0xff]
    %v152 = vld [vmem:[#allocation5 + $0x180] sm:$0xff]
    %v153 = vld [vmem:[#allocation5 + $0x188] sm:$0xff]
    %v154 = vld [vmem:[#allocation5 + $0x190] sm:$0xff]
    %v155 = vld [vmem:[#allocation5 + $0x198] sm:$0xff]
    %v156 = vld [vmem:[#allocation5 + $0x1a0] sm:$0xff]
    %v157 = vld [vmem:[#allocation5 + $0x1a8] sm:$0xff]
    %v158 = vld [vmem:[#allocation5 + $0x1b0] sm:$0xff]
    %v159 = vld [vmem:[#allocation5 + $0x1b8] sm:$0xff]
    %v160 = vld [vmem:[#allocation5 + $0x1c0] sm:$0xff]
    %v161 = vld [vmem:[#allocation5 + $0x1c8] sm:$0xff]
    %v162 = vld [vmem:[#allocation5 + $0x1d0] sm:$0xff]
    %v163 = vld [vmem:[#allocation5 + $0x1d8] sm:$0xff]
    %v164 = vld [vmem:[#allocation5 + $0x1e0] sm:$0xff]
    %v165 = vld [vmem:[#allocation5 + $0x1e8] sm:$0xff]
    %v166 = vld [vmem:[#allocation5 + $0x1f0] sm:$0xff]
    %v167 = vld [vmem:[#allocation5 + $0x1f8] sm:$0xff]
    %v168 = vld [vmem:[#allocation5 + $0x200] sm:$0xff]
    %v169 = vld [vmem:[#allocation5 + $0x208] sm:$0xff]
    %v170 = vld [vmem:[#allocation5 + $0x210] sm:$0xff]
    %v171 = vld [vmem:[#allocation5 + $0x218] sm:$0xff]
    %v172 = vld [vmem:[#allocation5 + $0x220] sm:$0xff]
    %v173 = vld [vmem:[#allocation5 + $0x228] sm:$0xff]
    %v174 = vld [vmem:[#allocation5 + $0x230] sm:$0xff]
    %v175 = vld [vmem:[#allocation5 + $0x238] sm:$0xff]
    %v176 = vld [vmem:[#allocation5 + $0x240] sm:$0xff]
    %v177 = vld [vmem:[#allocation5 + $0x248] sm:$0xff]
    %v178 = vld [vmem:[#allocation5 + $0x250] sm:$0xff]
    %v179 = vld [vmem:[#allocation5 + $0x258] sm:$0xff]
    %v180 = vld [vmem:[#allocation5 + $0x260] sm:$0xff]
    %v181 = vld [vmem:[#allocation5 + $0x268] sm:$0xff]
    %v182 = vld [vmem:[#allocation5 + $0x270] sm:$0xff]
    %v183 = vld [vmem:[#allocation5 + $0x278] sm:$0xff]
    %v184 = vld [vmem:[#allocation5 + $0x280] sm:$0xff]
    %v185 = vld [vmem:[#allocation5 + $0x288] sm:$0xff]
    %v186 = vld [vmem:[#allocation5 + $0x290] sm:$0xff]
    %v187 = vld [vmem:[#allocation5 + $0x298] sm:$0xff]
    %v188 = vld [vmem:[#allocation5 + $0x2a0] sm:$0xff]
    %v189 = vld [vmem:[#allocation5 + $0x2a8] sm:$0xff]
    %v190 = vld [vmem:[#allocation5 + $0x2b0] sm:$0xff]
    %v191 = vld [vmem:[#allocation5 + $0x2b8] sm:$0xff]
    %v192 = vld [vmem:[#allocation5 + $0x2c0] sm:$0xff]
    %v193 = vld [vmem:[#allocation5 + $0x2c8] sm:$0xff]
    %v194 = vld [vmem:[#allocation5 + $0x2d0] sm:$0xff]
    %v195 = vld [vmem:[#allocation5 + $0x2d8] sm:$0xff]
    %v196 = vld [vmem:[#allocation5 + $0x2e0] sm:$0xff]
    %v197 = vld [vmem:[#allocation5 + $0x2e8] sm:$0xff]
    %v198 = vld [vmem:[#allocation5 + $0x2f0] sm:$0xff]
    %v199 = vld [vmem:[#allocation5 + $0x2f8] sm:$0xff]
    %v200 = vld [vmem:[#allocation5 + $0x300] sm:$0xff]
    %v201 = vld [vmem:[#allocation5 + $0x308] sm:$0xff]
    %v202 = vld [vmem:[%s2] sm:$0x1]
    %v204 = vperm.slane %v202, 0
    %vm206 = vcmask 130048
    %v208 = vsel %vm206, %v96, 0
    %v211 = vsel %vm206, %v103, 0
    %213 = vmatpush.msra.mxu0 %v119
    %214 = vmatpush.msra.mxu0 %v118
    %215 = vmatpush.msra.mxu0 %v117
    %216 = vmatpush.msra.mxu0 %v116
    %217 = vmatpush.msra.mxu0 %v115
    %218 = vmatpush.msra.mxu0 %v114
    %219 = vmatpush.msra.mxu0 %v113
    %220 = vmatpush.msra.mxu0 %v112
    %221 = vmatpush.msra.mxu0 %v111
    %222 = vmatpush.msra.mxu0 %v110
    %223 = vmatpush.msra.mxu0 %v109
    %224 = vmatpush.msra.mxu0 %v108
    %225 = vmatpush.msra.mxu0 %v107
    %226 = vmatpush.msra.mxu0 %v106
    %227 = vmatpush.msra.mxu0 %v105
    %228 = vmatpush.msra.mxu0 %v104
    %229 = vmatmul.f32.gmra.mxu0 %v90
    %v230 = vpop.f32.mrf.mxu0
    %v231 = vadd.f32 %v204, %v230
    %232 = vmatmul.f32.gmra.mxu0 %v97
    %v233 = vpop.f32.mrf.mxu0
    %v234 = vadd.f32 %v204, %v233
    %235 = vdwg.mxu0
    %236 = vmatpush.msra.mxu0 %v135
    %237 = vmatpush.msra.mxu0 %v134
    %238 = vmatpush.msra.mxu0 %v133
    %239 = vmatpush.msra.mxu0 %v132
    %240 = vmatpush.msra.mxu0 %v131
    %241 = vmatpush.msra.mxu0 %v130
    %242 = vmatpush.msra.mxu0 %v129
    %243 = vmatpush.msra.mxu0 %v128
    %244 = vmatpush.msra.mxu0 %v127
    %245 = vmatpush.msra.mxu0 %v126
    %246 = vmatpush.msra.mxu0 %v125
    %247 = vmatpush.msra.mxu0 %v124
    %248 = vmatpush.msra.mxu0 %v123
    %249 = vmatpush.msra.mxu0 %v122
    %250 = vmatpush.msra.mxu0 %v121
    %251 = vmatpush.msra.mxu0 %v120
    %252 = vmatmul.f32.gmra.mxu0 %v91
    %v253 = vpop.f32.mrf.mxu0
    %v254 = vadd.f32 %v231, %v253
    %255 = vmatmul.f32.gmra.mxu0 %v98
    %v256 = vpop.f32.mrf.mxu0
    %v257 = vadd.f32 %v234, %v256
    %258 = vdwg.mxu0
    %259 = vmatpush.msra.mxu0 %v151
    %260 = vmatpush.msra.mxu0 %v150
    %261 = vmatpush.msra.mxu0 %v149
    %262 = vmatpush.msra.mxu0 %v148
    %263 = vmatpush.msra.mxu0 %v147
    %264 = vmatpush.msra.mxu0 %v146
    %265 = vmatpush.msra.mxu0 %v145
    %266 = vmatpush.msra.mxu0 %v144
    %267 = vmatpush.msra.mxu0 %v143
    %268 = vmatpush.msra.mxu0 %v142
    %269 = vmatpush.msra.mxu0 %v141
    %270 = vmatpush.msra.mxu0 %v140
    %271 = vmatpush.msra.mxu0 %v139
    %272 = vmatpush.msra.mxu0 %v138
    %273 = vmatpush.msra.mxu0 %v137
    %274 = vmatpush.msra.mxu0 %v136
    %275 = vmatmul.f32.gmra.mxu0 %v92
    %v276 = vpop.f32.mrf.mxu0
    %v277 = vadd.f32 %v254, %v276
    %278 = vmatmul.f32.gmra.mxu0 %v99
    %v279 = vpop.f32.mrf.mxu0
    %v280 = vadd.f32 %v257, %v279
    %281 = vdwg.mxu0
    %282 = vmatpush.msra.mxu0 %v167
    %283 = vmatpush.msra.mxu0 %v166
    %284 = vmatpush.msra.mxu0 %v165
    %285 = vmatpush.msra.mxu0 %v164
    %286 = vmatpush.msra.mxu0 %v163
    %287 = vmatpush.msra.mxu0 %v162
    %288 = vmatpush.msra.mxu0 %v161
    %289 = vmatpush.msra.mxu0 %v160
    %290 = vmatpush.msra.mxu0 %v159
    %291 = vmatpush.msra.mxu0 %v158
    %292 = vmatpush.msra.mxu0 %v157
    %293 = vmatpush.msra.mxu0 %v156
    %294 = vmatpush.msra.mxu0 %v155
    %295 = vmatpush.msra.mxu0 %v154
    %296 = vmatpush.msra.mxu0 %v153
    %297 = vmatpush.msra.mxu0 %v152
    %298 = vmatmul.f32.gmra.mxu0 %v93
    %v299 = vpop.f32.mrf.mxu0
    %v300 = vadd.f32 %v277, %v299
    %301 = vmatmul.f32.gmra.mxu0 %v100
    %v302 = vpop.f32.mrf.mxu0
    %v303 = vadd.f32 %v280, %v302
    %304 = vdwg.mxu0
    %305 = vmatpush.msra.mxu0 %v183
    %306 = vmatpush.msra.mxu0 %v182
    %307 = vmatpush.msra.mxu0 %v181
    %308 = vmatpush.msra.mxu0 %v180
    %309 = vmatpush.msra.mxu0 %v179
    %310 = vmatpush.msra.mxu0 %v178
    %311 = vmatpush.msra.mxu0 %v177
    %312 = vmatpush.msra.mxu0 %v176
    %313 = vmatpush.msra.mxu0 %v175
    %314 = vmatpush.msra.mxu0 %v174
    %315 = vmatpush.msra.mxu0 %v173
    %316 = vmatpush.msra.mxu0 %v172
    %317 = vmatpush.msra.mxu0 %v171
    %318 = vmatpush.msra.mxu0 %v170
    %319 = vmatpush.msra.mxu0 %v169
    %320 = vmatpush.msra.mxu0 %v168
    %321 = vmatmul.f32.gmra.mxu0 %v94
    %v322 = vpop.f32.mrf.mxu0
    %v323 = vadd.f32 %v300, %v322
    %324 = vmatmul.f32.gmra.mxu0 %v101
    %v325 = vpop.f32.mrf.mxu0
    %v326 = vadd.f32 %v303, %v325
    %327 = vdwg.mxu0
    %328 = vmatpush.msra.mxu0 %v199
    %329 = vmatpush.msra.mxu0 %v198
    %330 = vmatpush.msra.mxu0 %v197
    %331 = vmatpush.msra.mxu0 %v196
    %332 = vmatpush.msra.mxu0 %v195
    %333 = vmatpush.msra.mxu0 %v194
    %334 = vmatpush.msra.mxu0 %v193
    %335 = vmatpush.msra.mxu0 %v192
    %336 = vmatpush.msra.mxu0 %v191
    %337 = vmatpush.msra.mxu0 %v190
    %338 = vmatpush.msra.mxu0 %v189
    %339 = vmatpush.msra.mxu0 %v188
    %340 = vmatpush.msra.mxu0 %v187
    %341 = vmatpush.msra.mxu0 %v186
    %342 = vmatpush.msra.mxu0 %v185
    %343 = vmatpush.msra.mxu0 %v184
    %344 = vmatmul.f32.gmra.mxu0 %v95
    %v345 = vpop.f32.mrf.mxu0
    %v346 = vadd.f32 %v323, %v345
    %347 = vmatmul.f32.gmra.mxu0 %v102
    %v348 = vpop.f32.mrf.mxu0
    %v349 = vadd.f32 %v326, %v348
    %350 = vdwg.mxu0
    %351 = vmatpush.msra.mxu0 0.0
    %352 = vmatpush.msra.mxu0 0.0
    %353 = vmatpush.msra.mxu0 0.0
    %354 = vmatpush.msra.mxu0 0.0
    %355 = vmatpush.msra.mxu0 0.0
    %356 = vmatpush.msra.mxu0 0.0
    %357 = vmatpush.msra.mxu0 0.0
    %358 = vmatpush.msra.mxu0 0.0
    %359 = vmatpush.msra.mxu0 0.0
    %360 = vmatpush.msra.mxu0 0.0
    %361 = vmatpush.msra.mxu0 0.0
    %362 = vmatpush.msra.mxu0 0.0
    %363 = vmatpush.msra.mxu0 0.0
    %364 = vmatpush.msra.mxu0 0.0
    %365 = vmatpush.msra.mxu0 %v201
    %366 = vmatpush.msra.mxu0 %v200
    %367 = vmatmul.f32.gmra.mxu0 %v208
    %v368 = vpop.f32.mrf.mxu0
    %v369 = vadd.f32 %v346, %v368
    %370 = vmatmul.f32.gmra.mxu0 %v211
    %v371 = vpop.f32.mrf.mxu0
    %v372 = vadd.f32 %v349, %v371
    %373 = vdwg.mxu0
    %v374 = vmax.f32 %v369, 0.0
    %v375 = vmax.f32 %v372, 0.0
    %v376 = vld [vmem:[#allocation7] sm:$0xff]
    %v377 = vld [vmem:[#allocation7 + $0x8] sm:$0xff]
    %v378 = vld [vmem:[#allocation7 + $0x10] sm:$0xff]
    %v379 = vld [vmem:[#allocation7 + $0x18] sm:$0xff]
    %v380 = vld [vmem:[#allocation7 + $0x20] sm:$0xff]
    %v381 = vld [vmem:[#allocation7 + $0x28] sm:$0xff]
    %v382 = vld [vmem:[#allocation7 + $0x30] sm:$0xff]
    %v383 = vld [vmem:[#allocation7 + $0x38] sm:$0xff]
    %v384 = vld [vmem:[#allocation7 + $0x40] sm:$0xff]
    %v385 = vld [vmem:[#allocation7 + $0x48] sm:$0xff]
    %v386 = vld [vmem:[#allocation7 + $0x50] sm:$0xff]
    %v387 = vld [vmem:[#allocation7 + $0x58] sm:$0xff]
    %v388 = vld [vmem:[#allocation7 + $0x60] sm:$0xff]
    %v389 = vld [vmem:[#allocation7 + $0x68] sm:$0xff]
    %v390 = vld [vmem:[#allocation7 + $0x70] sm:$0xff]
    %v391 = vld [vmem:[#allocation7 + $0x78] sm:$0xff]
    %v392 = vld [vmem:[%s4] sm:$0x1]
    %v394 = vperm.slane %v392, 0
    %396 = vmatpush.msra.mxu0 %v391
    %397 = vmatpush.msra.mxu0 %v390
    %398 = vmatpush.msra.mxu0 %v389
    %399 = vmatpush.msra.mxu0 %v388
    %400 = vmatpush.msra.mxu0 %v387
    %401 = vmatpush.msra.mxu0 %v386
    %402 = vmatpush.msra.mxu0 %v385
    %403 = vmatpush.msra.mxu0 %v384
    %404 = vmatpush.msra.mxu0 %v383
    %405 = vmatpush.msra.mxu0 %v382
    %406 = vmatpush.msra.mxu0 %v381
    %407 = vmatpush.msra.mxu0 %v380
    %408 = vmatpush.msra.mxu0 %v379
    %409 = vmatpush.msra.mxu0 %v378
    %410 = vmatpush.msra.mxu0 %v377
    %411 = vmatpush.msra.mxu0 %v376
    %412 = vmatmul.f32.gmra.mxu0 %v374
    %v413 = vpop.f32.mrf.mxu0
    %v414 = vadd.f32 %v394, %v413
    %415 = vmatmul.f32.gmra.mxu0 %v375
    %v416 = vpop.f32.mrf.mxu0
    %v417 = vadd.f32 %v394, %v416
    %418 = vdwg.mxu0
    %v419 = vmax.f32 %v414, 0.0
    %v420 = vmax.f32 %v417, 0.0
    %v421 = vld [vmem:[#allocation8] sm:$0xff]
    %v422 = vld [vmem:[#allocation8 + $0x8] sm:$0xff]
    %v423 = vld [vmem:[#allocation8 + $0x10] sm:$0xff]
    %v424 = vld [vmem:[#allocation8 + $0x18] sm:$0xff]
    %v425 = vld [vmem:[#allocation8 + $0x20] sm:$0xff]
    %v426 = vld [vmem:[#allocation8 + $0x28] sm:$0xff]
    %v427 = vld [vmem:[#allocation8 + $0x30] sm:$0xff]
    %v428 = vld [vmem:[#allocation8 + $0x38] sm:$0xff]
    %v429 = vld [vmem:[#allocation8 + $0x40] sm:$0xff]
    %v430 = vld [vmem:[#allocation8 + $0x48] sm:$0xff]
    %v431 = vld [vmem:[#allocation8 + $0x50] sm:$0xff]
    %v432 = vld [vmem:[#allocation8 + $0x58] sm:$0xff]
    %v433 = vld [vmem:[#allocation8 + $0x60] sm:$0xff]
    %v434 = vld [vmem:[#allocation8 + $0x68] sm:$0xff]
    %v435 = vld [vmem:[#allocation8 + $0x70] sm:$0xff]
    %v436 = vld [vmem:[#allocation8 + $0x78] sm:$0xff]
    %v437 = vld [vmem:[%s6] sm:$0x1]
    %v439 = vperm.slane %v437, 0
    %441 = vmatpush.msra.mxu0 %v436
    %442 = vmatpush.msra.mxu0 %v435
    %443 = vmatpush.msra.mxu0 %v434
    %444 = vmatpush.msra.mxu0 %v433
    %445 = vmatpush.msra.mxu0 %v432
    %446 = vmatpush.msra.mxu0 %v431
    %447 = vmatpush.msra.mxu0 %v430
    %448 = vmatpush.msra.mxu0 %v429
    %449 = vmatpush.msra.mxu0 %v428
    %450 = vmatpush.msra.mxu0 %v427
    %451 = vmatpush.msra.mxu0 %v426
    %452 = vmatpush.msra.mxu0 %v425
    %453 = vmatpush.msra.mxu0 %v424
    %454 = vmatpush.msra.mxu0 %v423
    %455 = vmatpush.msra.mxu0 %v422
    %456 = vmatpush.msra.mxu0 %v421
    %457 = vmatmul.f32.gmra.mxu0 %v419
    %v458 = vpop.f32.mrf.mxu0
    %v459 = vadd.f32 %v439, %v458
    %460 = vmatmul.f32.gmra.mxu0 %v420
    %v461 = vpop.f32.mrf.mxu0
    %v462 = vadd.f32 %v439, %v461
    %463 = vdwg.mxu0
    %464 = vst [vmem:[#allocation10] sm:$0xff] %v459
    %465 = vst [vmem:[#allocation10 + $0x8] sm:$0xff] %v462
    // Predicated region
    $region46: #{tpu_custom_call.1} parent=1 // pred_check
      _
    $region47: #{tpu_custom_call.1} parent=1 // pred_check_branch
      %467 = sbr.rel (0) target = $region49
    $region48: #{tpu_custom_call.1} parent=1 // pred_region
      %469 = vsyncadd [#allocation4], 128
      %s470 = sshll.u32 [#allocation10], 4
      %s471 = int_to_ptr.vmem [resolvable:$true] %s470
      %s472 = sshll.u32 %s7, 4
      %s473 = int_to_ptr.hbm [resolvable:$true] %s472
      %478 = dma.vmem_to_hbm [thread:$0]  %s471, 128, %s473, [#allocation4], 128, 128, 8
    $region49: #{tpu_custom_call.1} parent=1 // pred_fallthru
      _
    // Predicated region
    $region50: #{tpu_custom_call.1} parent=1 // pred_check
      _
    $region51: #{tpu_custom_call.1} parent=1 // pred_check_branch
      %480 = sbr.rel (0) target = $region53
    $region52: #{tpu_custom_call.1} parent=1 // pred_region
      %482 = dma.done [#allocation4], 256
    $region53: #{tpu_custom_call.1} parent=1 // pred_fallthru
      _
    %483 = vsyncpa [#allocation3], 1
    %484 = vsyncpa [#allocation6], 1
    %485 = vsyncpa [#allocation9], 1
    %486 = vsyncpa [#allocation4], 1

</llo_original>
